<compile_context>
chip_gen: v7x
topology: tpu7x:2x2x1
jax: 0.10.0
libtpu: 0.0.40
codegen_flags: <defaults>
</compile_context>

<pallas_src>
import functools
import numpy as np
import jax
import jax.numpy as jnp
from jax.experimental import pallas as pl
from jax.experimental.pallas import tpu as pltpu


# ----------------------------- Pallas kernel ---------------------------------
def _afm_kernel(emb_ref, first_ref, wbd_ref, b_ref, hsel_ref, mp_ref, out_ref,
                *, pairs, emb_dim, mxu_dtype):
    D = emb_dim

    # In-kernel pair gather: static, vreg-aligned sublane slices of the (F*D, TILE_B)
    # batch-in-lanes embedding tile.  Element-wise bi-interaction stays f32 on the VPU.
    # TODO(synk): for large n_fields replace this static unroll with a
    # lax.fori_loop(..., unroll=True) driven by prefetched SMEM pair-index tables.
    slabs = []
    for fi, fj in pairs:
        ei = emb_ref[fi * D:(fi + 1) * D, :].astype(jnp.float32)
        ej = emb_ref[fj * D:(fj + 1) * D, :].astype(jnp.float32)
        slabs.append(ei * ej)                                    # (D, TILE_B)
    biint = jnp.concatenate(slabs, axis=0)                       # (P*D, TILE_B), row k = p*D+d

    # Attention MLP fused across all pairs: one block-diag kron(I_P, W^T) matmul and one
    # kron(I_P, h^T) matmul, both lane-dense (N = TILE_B) on the MXU with f32 accumulation.
    tp = jnp.dot(wbd_ref[...].astype(mxu_dtype), biint.astype(mxu_dtype),
                 preferred_element_type=jnp.float32)             # (P*A, TILE_B)
    tw = jnp.maximum(tp + b_ref[...], 0.0)                       # relu(+attention_b), VPU
    logits = jnp.dot(hsel_ref[...].astype(mxu_dtype), tw.astype(mxu_dtype),
                     preferred_element_type=jnp.float32)         # (P, TILE_B)

    # Softmax over the pair axis (torch dim=1 -> sublane axis here).
    m = jnp.max(logits, axis=0, keepdims=True)
    e = jnp.exp(logits - m)
    attn = e * pl.reciprocal(jnp.sum(e, axis=0, keepdims=True), approx=True)   # (P, TILE_B)

    # torch `.repeat(1, D)`: flat index k = p*D + d carries attn[:, k % P] and att_p[k % D].
    # mp[r, k] = att_p[k % D] * [k % P == r]  ->  second = sum_r attn[r] * (mp @ biint)[r].
    s = jnp.dot(mp_ref[...].astype(mxu_dtype), biint.astype(mxu_dtype),
                preferred_element_type=jnp.float32)              # (P, TILE_B)
    second = jnp.sum(attn * s, axis=0, keepdims=True)            # (1, TILE_B)

    out_ref[...] = jax.nn.sigmoid(first_ref[...] + second)       # lane-dense (1, TILE_B) store


# ----------------------------- tiling / pallas_call ---------------------------
def _pick_tile_b(batch_size, n_fields, emb_dim, n_pairs, attn_dim, ship_itemsize):
    P, D, A = n_pairs, emb_dim, attn_dim
    per_row = (2 * n_fields * D * ship_itemsize          # double-buffered emb tile
               + 2 * (4 + 4)                             # first / out tiles
               + 4 * (2 * P * D + 2 * P * A + 8 * P))    # compiler-managed f32 temporaries
    budget = 24 * 1024 * 1024   # stays inside the 48 MiB scoped limit (v7x: 64 MiB physical)
    tb = budget // max(per_row, 1)
    tb = max(128, min(8192, (tb // 128) * 128))          # lane multiple, amortize step overhead
    # keep >= ~4 batch tiles when the batch allows it so the "parallel" axis can be
    # sharded across v7x's 2 TensorCores while still amortizing the ~0.35us/step overhead
    quarter = -(-batch_size // 4)                        # ceil(B / 4)
    tgt = max(128, ((quarter + 127) // 128) * 128)
    return int(min(tb, tgt))


def _afm_pallas_call(emb_t, first_row, w_bd, b_col, h_sel, m_p, *,
                     tile_b, mxu_dtype, pairs, emb_dim):
    fd, b_pad = emb_t.shape

    kernel = functools.partial(_afm_kernel, pairs=pairs, emb_dim=emb_dim,
                               mxu_dtype=mxu_dtype)

    def lane_spec(rows):                       # batch-in-lanes tiles
        return pl.BlockSpec((rows, tile_b), lambda i: (0, i))

    def const_spec(arr):                       # tiny resident params (constant index_map)
        return pl.BlockSpec(arr.shape, lambda i: (0, 0))

    return pl.pallas_call(
        kernel,
        out_shape=jax.ShapeDtypeStruct((1, b_pad), jnp.float32),
        grid=(b_pad // tile_b,),
        in_specs=[
            lane_spec(fd),          # (F*D, TILE_B) field embeddings, batch in lanes
            lane_spec(1),           # (1, TILE_B)   first-order + bias
            const_spec(w_bd),       # (P*A, P*D)    kron(I_P, attention_w^T)
            const_spec(b_col),      # (P*A, 1)      attention_b repeated per pair
            const_spec(h_sel),      # (P, P*A)      kron(I_P, attention_h^T)
            const_spec(m_p),        # (P, P*D)      modulo-P selection * attention_p
        ],
        out_specs=lane_spec(1),     # lane-dense (1, TILE_B) output blocks
        compiler_params=pltpu.CompilerParams(
            dimension_semantics=("parallel",),   # v7x: shard batch tiles over 2 TCs
            vmem_limit_bytes=48 * 1024 * 1024,   # <= v7x physical 64 MiB
        ),
    )(emb_t, first_row, w_bd, b_col, h_sel, m_p)


# ----------------------------- forward wrapper --------------------------------
def attention_fm_forward(params, batch_size, index, feats, values, *,
                         ship_bf16=False, mxu_bf16=False, tile_b=None):
    bias = params["bias"]             # (1, 1)
    weights = params["weights"]       # (10, 1)
    embedding = params["embedding"]   # (10, D)
    att_w = params["attention_w"]     # (D, A)
    att_b = params["attention_b"]     # (A, 1)
    att_h = params["attention_h"]     # (A, 1)
    att_p = params["attention_p"]     # (D, 1)

    # F.embedding gathers (data-dependent, plain-JAX glue)
    batch_first = weights[feats]      # (N, 1)
    batch_second = embedding[feats]   # (N, D)

    # ---- first_order ----
    # TODO(synk): scatter_add_ is a data-dependent scatter; kept in plain JAX, not in-kernel.
    srcs = batch_first.reshape(-1) * values.reshape(-1)
    out0 = jnp.zeros((batch_size,), jnp.float32).at[index].add(srcs)
    first_row = (out0 + bias[0, 0]).reshape(1, batch_size).astype(jnp.float32)

    # ---- second_order: static pair plumbing + tiny resident attention matrices ----
    N, D = batch_second.shape
    n_fields = N // batch_size
    A = att_w.shape[1]
    idx_i, idx_j = np.triu_indices(n_fields, 1)
    pairs = tuple(zip(idx_i.tolist(), idx_j.tolist()))
    P = len(pairs)

    ship_dtype = jnp.bfloat16 if ship_bf16 else jnp.float32   # HBM traffic (any generation)
    mxu_dtype = jnp.bfloat16 if mxu_bf16 else jnp.float32     # MXU operand dtype

    # batch-in-lanes: (F*D, B) so every lane of every vreg is a batch element
    emb_t = batch_second.reshape(batch_size, n_fields * D).T.astype(ship_dtype)

    # tiny resident matrices (~few KiB total): block-diag W^T, per-pair b, h-selector, and
    # the modulo-P/att_p matrix that reproduces torch's `.repeat(1, D)` weighting exactly.
    eye_p = jnp.eye(P, dtype=jnp.float32)
    w_bd = jnp.kron(eye_p, att_w.T)                                   # (P*A, P*D)
    h_sel = jnp.kron(eye_p, att_h.reshape(1, A))                      # (P, P*A)
    b_col = jnp.tile(att_b.reshape(A, 1), (P, 1))                     # (P*A, 1)
    kidx = np.arange(P * D)
    sel = (kidx[None, :] % P == np.arange(P)[:, None]).astype(np.float32)   # (P, P*D) 0/1
    m_p = jnp.asarray(sel) * jnp.tile(att_p.reshape(-1), P)[None, :]        # (P, P*D)

    tb = tile_b if tile_b is not None else _pick_tile_b(
        batch_size, n_fields, D, P, A, jnp.dtype(ship_dtype).itemsize)
    b_pad = int(pl.cdiv(batch_size, tb)) * tb
    if b_pad != batch_size:
        pad = b_pad - batch_size
        emb_t = jnp.pad(emb_t, ((0, 0), (0, pad)))
        first_row = jnp.pad(first_row, ((0, 0), (0, pad)))

    out_row = _afm_pallas_call(emb_t, first_row, w_bd, b_col, h_sel, m_p,
                               tile_b=tb, mxu_dtype=mxu_dtype,
                               pairs=pairs, emb_dim=D)                # (1, B_pad)

    return out_row[:, :batch_size]                                    # matches torch (1, B)


# ----------------------------- pure-JAX reference ------------------------------
def attention_fm_reference(params, batch_size, index, feats, values):
    bias, weights, embedding = params["bias"], params["weights"], params["embedding"]
    att_w, att_b, att_h, att_p = (params["attention_w"], params["attention_b"],
                                  params["attention_h"], params["attention_p"])
    batch_first = weights[feats]
    batch_second = embedding[feats]

    srcs = batch_first.reshape(1, -1) * values.reshape(1, -1)
    out0 = jnp.zeros((batch_size,), jnp.float32).at[index].add(srcs.reshape(-1))
    first = out0 + bias                                            # (1, B) by broadcasting

    N, D = batch_second.shape
    n_fields = N // batch_size
    idx_i, idx_j = np.triu_indices(n_fields, 1)
    P = int(idx_i.shape[0])
    emb3 = batch_second.reshape(batch_size, n_fields, D)
    biint = emb3[:, idx_i, :] * emb3[:, idx_j, :]                  # (B, P, D)
    temp_mul = biint @ att_w                                       # (B, P, A)
    temp_w = jax.nn.relu(temp_mul.reshape(batch_size, -1) +
                         jnp.tile(att_b.reshape(-1), P))
    attn = jax.nn.softmax(temp_w.reshape(batch_size, P, -1) @ att_h, axis=1)   # (B, P, 1)
    ws = jnp.tile(attn.reshape(batch_size, P), (1, D)) * biint.reshape(batch_size, -1)
    att_out = (ws.reshape(batch_size, P, -1) @ att_p.reshape(-1)).sum(1)       # (B,)
    return jax.nn.sigmoid(first + att_out)                         # (1, B)


# --------------------------------- main ---------------------------------------
if __name__ == "__main__":
    fake_input_dim = 10
    n_fields = 4
    embedding_dim = 8
    attention_dim = 4

    key = jax.random.PRNGKey(0)
    ks = jax.random.split(key, 8)

    def xavier(k, shape):
        lim = float(np.sqrt(6.0 / (shape[0] + shape[1])))
        return jax.random.uniform(k, shape, jnp.float32, -lim, lim)

    params = {
        "bias": jnp.zeros((1, 1), jnp.float32),                     # torch: zeros (never re-init)
        "weights": xavier(ks[0], (fake_input_dim, 1)),
        "embedding": xavier(ks[1], (fake_input_dim, embedding_dim)),
        "attention_w": xavier(ks[2], (embedding_dim, attention_dim)),
        "attention_b": xavier(ks[3], (attention_dim, 1)),
        "attention_h": xavier(ks[4], (attention_dim, 1)),
        "attention_p": xavier(ks[5], (embedding_dim, 1)),
    }

    def make_batch(batch_size, k1, k2):
        n = batch_size * n_fields
        feats = jax.random.randint(k1, (n,), 0, fake_input_dim, dtype=jnp.int32)
        values = jax.random.uniform(k2, (n,), jnp.float32, 0.1, 1.0)
        index = jnp.repeat(jnp.arange(batch_size, dtype=jnp.int32), n_fields)
        return index, feats, values

    # 1) f32 path, single 128-lane batch tile (B=8 padded to 128).  Tolerance 1e-3
    #    accounts for the EUP approx reciprocal used for softmax normalization.
    idx, feats, vals = make_batch(8, ks[6], ks[7])
    out = jax.block_until_ready(attention_fm_forward(params, 8, idx, feats, vals))
    ref = jax.block_until_ready(attention_fm_reference(params, 8, idx, feats, vals))
    assert out.shape == (1, 8), out.shape
    np.testing.assert_allclose(np.asarray(out), np.asarray(ref), rtol=1e-3, atol=1e-3)

    # 2) f32 path, multi-tile grid with batch padding (B=300, TILE_B=128 -> grid=(3,)).
    kk = jax.random.split(ks[6], 2)
    idx2, feats2, vals2 = make_batch(300, kk[0], kk[1])
    out2 = jax.block_until_ready(
        attention_fm_forward(params, 300, idx2, feats2, vals2, tile_b=128))
    ref2 = jax.block_until_ready(
        attention_fm_reference(params, 300, idx2, feats2, vals2))
    assert out2.shape == (1, 300), out2.shape
    np.testing.assert_allclose(np.asarray(out2), np.asarray(ref2), rtol=1e-3, atol=1e-3)

    # 3) bf16-shipped embeddings + bf16 MXU operands (halves HBM traffic on v5e/v6e/v7x);
    #    compared against the f32 reference with a bf16-appropriate tolerance.
    out3 = jax.block_until_ready(
        attention_fm_forward(params, 8, idx, feats, vals, ship_bf16=True, mxu_bf16=True))
    np.testing.assert_allclose(np.asarray(out3), np.asarray(ref), rtol=2e-2, atol=2e-2)

    print("KERNEL_OK")
</pallas_src>

<mosaic_0001>
module attributes {stable_mosaic.version = 11 : i64} {
  func.func @_afm_kernel(%arg0: i32, %arg1: memref<32x128xf32, #tpu.memory_space<vmem>>, %arg2: memref<1x128xf32, #tpu.memory_space<vmem>>, %arg3: memref<24x48xf32, #tpu.memory_space<vmem>>, %arg4: memref<24x1xf32, #tpu.memory_space<vmem>>, %arg5: memref<6x24xf32, #tpu.memory_space<vmem>>, %arg6: memref<6x48xf32, #tpu.memory_space<vmem>>, %arg7: memref<1x128xf32, #tpu.memory_space<vmem>>) attributes {dimension_semantics = [#tpu.dimension_semantics<parallel>], iteration_bounds = array<i64: 1>, scalar_prefetch = 0 : i64, scratch_operands = 0 : i64, tpu.core_type = #tpu.core_type<tc>, window_params = [{transform_indices = @transform_0, window_bounds = array<i64: 32, 128>}, {transform_indices = @transform_1, window_bounds = array<i64: 1, 128>}, {pipeline_mode = #tpu.pipeline_mode<synchronous>, transform_indices = @transform_2, window_bounds = array<i64: 24, 48>}, {pipeline_mode = #tpu.pipeline_mode<synchronous>, transform_indices = @transform_3, window_bounds = array<i64: 24, 1>}, {pipeline_mode = #tpu.pipeline_mode<synchronous>, transform_indices = @transform_4, window_bounds = array<i64: 6, 24>}, {pipeline_mode = #tpu.pipeline_mode<synchronous>, transform_indices = @transform_5, window_bounds = array<i64: 6, 48>}, {transform_indices = @transform_6, window_bounds = array<i64: 1, 128>}]} {
    %c0 = arith.constant 0 : index
    %c0_0 = arith.constant 0 : index
    %0 = vector.load %arg1[%c0, %c0_0] : memref<32x128xf32, #tpu.memory_space<vmem>>, vector<8x128xf32>
    %c8 = arith.constant 8 : index
    %c0_1 = arith.constant 0 : index
    %1 = vector.load %arg1[%c8, %c0_1] : memref<32x128xf32, #tpu.memory_space<vmem>>, vector<8x128xf32>
    %2 = arith.mulf %0, %1 : vector<8x128xf32>
    %c0_2 = arith.constant 0 : index
    %c0_3 = arith.constant 0 : index
    %3 = vector.load %arg1[%c0_2, %c0_3] : memref<32x128xf32, #tpu.memory_space<vmem>>, vector<8x128xf32>
    %c16 = arith.constant 16 : index
    %c0_4 = arith.constant 0 : index
    %4 = vector.load %arg1[%c16, %c0_4] : memref<32x128xf32, #tpu.memory_space<vmem>>, vector<8x128xf32>
    %5 = arith.mulf %3, %4 : vector<8x128xf32>
    %c0_5 = arith.constant 0 : index
    %c0_6 = arith.constant 0 : index
    %6 = vector.load %arg1[%c0_5, %c0_6] : memref<32x128xf32, #tpu.memory_space<vmem>>, vector<8x128xf32>
    %c24 = arith.constant 24 : index
    %c0_7 = arith.constant 0 : index
    %7 = vector.load %arg1[%c24, %c0_7] : memref<32x128xf32, #tpu.memory_space<vmem>>, vector<8x128xf32>
    %8 = arith.mulf %6, %7 : vector<8x128xf32>
    %c8_8 = arith.constant 8 : index
    %c0_9 = arith.constant 0 : index
    %9 = vector.load %arg1[%c8_8, %c0_9] : memref<32x128xf32, #tpu.memory_space<vmem>>, vector<8x128xf32>
    %c16_10 = arith.constant 16 : index
    %c0_11 = arith.constant 0 : index
    %10 = vector.load %arg1[%c16_10, %c0_11] : memref<32x128xf32, #tpu.memory_space<vmem>>, vector<8x128xf32>
    %11 = arith.mulf %9, %10 : vector<8x128xf32>
    %c8_12 = arith.constant 8 : index
    %c0_13 = arith.constant 0 : index
    %12 = vector.load %arg1[%c8_12, %c0_13] : memref<32x128xf32, #tpu.memory_space<vmem>>, vector<8x128xf32>
    %c24_14 = arith.constant 24 : index
    %c0_15 = arith.constant 0 : index
    %13 = vector.load %arg1[%c24_14, %c0_15] : memref<32x128xf32, #tpu.memory_space<vmem>>, vector<8x128xf32>
    %14 = arith.mulf %12, %13 : vector<8x128xf32>
    %c16_16 = arith.constant 16 : index
    %c0_17 = arith.constant 0 : index
    %15 = vector.load %arg1[%c16_16, %c0_17] : memref<32x128xf32, #tpu.memory_space<vmem>>, vector<8x128xf32>
    %c24_18 = arith.constant 24 : index
    %c0_19 = arith.constant 0 : index
    %16 = vector.load %arg1[%c24_18, %c0_19] : memref<32x128xf32, #tpu.memory_space<vmem>>, vector<8x128xf32>
    %17 = arith.mulf %15, %16 : vector<8x128xf32>
    %18 = tpu.concatenate %2, %5, %8, %11, %14, %17 in 0 : vector<8x128xf32>, vector<8x128xf32>, vector<8x128xf32>, vector<8x128xf32>, vector<8x128xf32>, vector<8x128xf32> -> vector<48x128xf32>
    %c0_20 = arith.constant 0 : index
    %c0_21 = arith.constant 0 : index
    %19 = vector.load %arg3[%c0_20, %c0_21] : memref<24x48xf32, #tpu.memory_space<vmem>>, vector<24x48xf32>
    %cst = arith.constant dense<0.000000e+00> : vector<24x128xf32>
    %20 = tpu.matmul %19, %18, %cst {dimension_numbers = #tpu.dot_dimension_numbers<[1], [0], [0], [1], [0, 0, 1, 1], [], []>} : vector<24x48xf32>, vector<48x128xf32>, vector<24x128xf32> -> vector<24x128xf32>
    %c0_22 = arith.constant 0 : index
    %c0_23 = arith.constant 0 : index
    %21 = vector.load %arg4[%c0_22, %c0_23] : memref<24x1xf32, #tpu.memory_space<vmem>>, vector<24x1xf32>
    %22 = vector.broadcast %21 : vector<24x1xf32> to vector<24x128xf32>
    %23 = arith.addf %20, %22 : vector<24x128xf32>
    %cst_24 = arith.constant 0.000000e+00 : f32
    %24 = vector.broadcast %cst_24 : f32 to vector<24x128xf32>
    %25 = arith.maximumf %23, %24 : vector<24x128xf32>
    %c0_25 = arith.constant 0 : index
    %c0_26 = arith.constant 0 : index
    %26 = vector.load %arg5[%c0_25, %c0_26] : memref<6x24xf32, #tpu.memory_space<vmem>>, vector<6x24xf32>
    %cst_27 = arith.constant dense<0.000000e+00> : vector<6x128xf32>
    %27 = tpu.matmul %26, %25, %cst_27 {dimension_numbers = #tpu.dot_dimension_numbers<[1], [0], [0], [1], [0, 0, 1, 1], [], []>} : vector<6x24xf32>, vector<24x128xf32>, vector<6x128xf32> -> vector<6x128xf32>
    %cst_28 = arith.constant dense<0xFF800000> : vector<128xf32>
    %28 = vector.multi_reduction <maximumf>, %27, %cst_28 [0] : vector<6x128xf32> to vector<128xf32>
    %29 = vector.shape_cast %28 : vector<128xf32> to vector<1x128xf32>
    %30 = vector.broadcast %29 : vector<1x128xf32> to vector<6x128xf32>
    %31 = arith.subf %27, %30 : vector<6x128xf32>
    %32 = math.exp %31 : vector<6x128xf32>
    %cst_29 = arith.constant dense<0.000000e+00> : vector<128xf32>
    %33 = vector.multi_reduction <add>, %32, %cst_29 [0] : vector<6x128xf32> to vector<128xf32>
    %34 = vector.shape_cast %33 : vector<128xf32> to vector<1x128xf32>
    %35 = tpu.reciprocal %34 {approx = true} : vector<1x128xf32> -> vector<1x128xf32>
    %36 = vector.broadcast %35 : vector<1x128xf32> to vector<6x128xf32>
    %37 = arith.mulf %32, %36 : vector<6x128xf32>
    %c0_30 = arith.constant 0 : index
    %c0_31 = arith.constant 0 : index
    %38 = vector.load %arg6[%c0_30, %c0_31] : memref<6x48xf32, #tpu.memory_space<vmem>>, vector<6x48xf32>
    %cst_32 = arith.constant dense<0.000000e+00> : vector<6x128xf32>
    %39 = tpu.matmul %38, %18, %cst_32 {dimension_numbers = #tpu.dot_dimension_numbers<[1], [0], [0], [1], [0, 0, 1, 1], [], []>} : vector<6x48xf32>, vector<48x128xf32>, vector<6x128xf32> -> vector<6x128xf32>
    %40 = arith.mulf %37, %39 : vector<6x128xf32>
    %cst_33 = arith.constant dense<0.000000e+00> : vector<128xf32>
    %41 = vector.multi_reduction <add>, %40, %cst_33 [0] : vector<6x128xf32> to vector<128xf32>
    %42 = vector.shape_cast %41 : vector<128xf32> to vector<1x128xf32>
    %c0_34 = arith.constant 0 : index
    %c0_35 = arith.constant 0 : index
    %43 = vector.load %arg2[%c0_34, %c0_35] : memref<1x128xf32, #tpu.memory_space<vmem>>, vector<1x128xf32>
    %44 = arith.addf %43, %42 : vector<1x128xf32>
    %45 = arith.negf %44 : vector<1x128xf32>
    %46 = math.exp %45 : vector<1x128xf32>
    %cst_36 = arith.constant 1.000000e+00 : f32
    %47 = vector.broadcast %cst_36 : f32 to vector<1x128xf32>
    %48 = arith.addf %47, %46 : vector<1x128xf32>
    %49 = arith.divf %47, %48 : vector<1x128xf32>
    %c0_37 = arith.constant 0 : index
    %c0_38 = arith.constant 0 : index
    %50 = vector.load %arg7[%c0_37, %c0_38] : memref<1x128xf32, #tpu.memory_space<vmem>>, vector<1x128xf32>
    tpu.vector_store %arg7[%c0_37, %c0_38], %49 {strides = array<i32>} : memref<1x128xf32, #tpu.memory_space<vmem>>, vector<1x128xf32>,
    return
  }
  func.func @transform_0(%arg0: i32) -> (i32, i32) {
    %c0_i32 = arith.constant 0 : i32
    %c0_i32_0 = arith.constant 0 : i32
    return %c0_i32, %arg0 : i32, i32
  }
  func.func @transform_1(%arg0: i32) -> (i32, i32) {
    %c0_i32 = arith.constant 0 : i32
    %c0_i32_0 = arith.constant 0 : i32
    return %c0_i32, %arg0 : i32, i32
  }
  func.func @transform_2(%arg0: i32) -> (i32, i32) {
    %c0_i32 = arith.constant 0 : i32
    %c0_i32_0 = arith.constant 0 : i32
    %c0_i32_1 = arith.constant 0 : i32
    return %c0_i32, %c0_i32_0 : i32, i32
  }
  func.func @transform_3(%arg0: i32) -> (i32, i32) {
    %c0_i32 = arith.constant 0 : i32
    %c0_i32_0 = arith.constant 0 : i32
    %c0_i32_1 = arith.constant 0 : i32
    return %c0_i32, %c0_i32_0 : i32, i32
  }
  func.func @transform_4(%arg0: i32) -> (i32, i32) {
    %c0_i32 = arith.constant 0 : i32
    %c0_i32_0 = arith.constant 0 : i32
    %c0_i32_1 = arith.constant 0 : i32
    return %c0_i32, %c0_i32_0 : i32, i32
  }
  func.func @transform_5(%arg0: i32) -> (i32, i32) {
    %c0_i32 = arith.constant 0 : i32
    %c0_i32_0 = arith.constant 0 : i32
    %c0_i32_1 = arith.constant 0 : i32
    return %c0_i32, %c0_i32_0 : i32, i32
  }
  func.func @transform_6(%arg0: i32) -> (i32, i32) {
    %c0_i32 = arith.constant 0 : i32
    %c0_i32_0 = arith.constant 0 : i32
    return %c0_i32, %arg0 : i32, i32
  }
}

</mosaic_0001>

<llo_original>
// kernel: tpu_custom_call.1
$region0: #{tpu_custom_call.1}
  #allocation0 [shape = 'u32[]', space=smem, size = 0x4, offset = 0x4, fixed_abs, tag = 'smem constant byte address 0x4 - core index']
  #allocation1 [shape = 'u32[144,128]{1,0:T(1,128)}', space=vmem, size = 0x12000, scoped, tag = 'internal scratch']
  %s0 = inlined_call_operand.hbm [shape: f32[32,128], index: 0, kind: input, shape index: {}]
  %s1 = inlined_call_operand.hbm [shape: f32[1,128], index: 1, kind: input, shape index: {}]
  %s2 = inlined_call_operand.vmem [shape: f32[24,48], index: 2, kind: input, shape index: {}]
  %s3 = inlined_call_operand.vmem [shape: f32[24,1], index: 3, kind: input, shape index: {}]
  %s4 = inlined_call_operand.vmem [shape: f32[6,24], index: 4, kind: input, shape index: {}]
  %s5 = inlined_call_operand.vmem [shape: f32[6,48], index: 5, kind: input, shape index: {}]
  %s6 = inlined_call_operand.hbm [shape: f32[1,128], index: 6, kind: output, shape index: {}]
  %s7 = sld [smem:[#allocation0]]
  $region42: #{tpu_custom_call.1} parent=0
    _
  %s9 = ssub.s32 1, %s7
  %s10 = scalar_select 0, %s9, %s7
  $region1: #{tpu_custom_call.1} parent=0
    #allocation2 [shape = 'u8[16384]{0}', space=vmem, size = 0x4000, scoped, tag = 'input window, operand 0, single buffered']
    #allocation3 [shape = 's32[1]{0}', space=sflag, size = 0x4, scoped, tag = 'scoped memory for tpu_custom_call.1']
    #allocation4 [shape = 's32[1]{0}', space=sflag, size = 0x4, scoped, tag = 'scoped memory for tpu_custom_call.1']
    #allocation5 [shape = 'u8[512]{0}', space=vmem, size = 0x400, scoped, tag = 'input window, operand 1, single buffered']
    #allocation6 [shape = 's32[1]{0}', space=sflag, size = 0x4, scoped, tag = 'scoped memory for tpu_custom_call.1']
    #allocation7 [shape = 'u8[512]{0}', space=vmem, size = 0x400, scoped, tag = 'output window, operand 0, single buffered']
    %11 = vsyncpa [#allocation3], 0
    %12 = vsyncpa [#allocation6], 0
    %13 = vsyncpa [#allocation4], 0
    // Predicated region
    $region2: #{tpu_custom_call.1} parent=1 // pred_check
      _
    $region3: #{tpu_custom_call.1} parent=1 // pred_check_branch
      %15 = sbr.rel (0) target = $region5
    $region4: #{tpu_custom_call.1} parent=1 // pred_region
      %s17 = ssub.s32 512, 512
      %18 = vsyncadd [#allocation3], %s17
      %s19 = sshll.u32 [#allocation2], 4
      %s20 = int_to_ptr.vmem [resolvable:$true] %s19
      %25 = dma.hbm_to_vmem [thread:$0]  %s0, 512, %s20, [#allocation3], 128, 128, 8
    $region5: #{tpu_custom_call.1} parent=1 // pred_fallthru
      _
    // Predicated region
    $region6: #{tpu_custom_call.1} parent=1 // pred_check
      _
    $region7: #{tpu_custom_call.1} parent=1 // pred_check_branch
      %27 = sbr.rel (0) target = $region9
    $region8: #{tpu_custom_call.1} parent=1 // pred_region
      %s29 = ssub.s32 16, 16
      %30 = vsyncadd [#allocation6], %s29
      %s32 = sshll.u32 [#allocation5], 4
      %s33 = int_to_ptr.vmem [resolvable:$true] %s32
      %35 = dma.hbm_to_vmem [thread:$0]  %s1, 16, %s33, [#allocation6]
    $region9: #{tpu_custom_call.1} parent=1 // pred_fallthru
      _
    // Predicated region
    $region10: #{tpu_custom_call.1} parent=1 // pred_check
      _
    $region11: #{tpu_custom_call.1} parent=1 // pred_check_branch
      %37 = sbr.rel (0) target = $region13
    $region12: #{tpu_custom_call.1} parent=1 // pred_region
      _
    $region13: #{tpu_custom_call.1} parent=1 // pred_fallthru
      _
    // Predicated region
    $region14: #{tpu_custom_call.1} parent=1 // pred_check
      _
    $region15: #{tpu_custom_call.1} parent=1 // pred_check_branch
      %39 = sbr.rel (0) target = $region17
    $region16: #{tpu_custom_call.1} parent=1 // pred_region
      _
    $region17: #{tpu_custom_call.1} parent=1 // pred_fallthru
      _
    // Predicated region
    $region18: #{tpu_custom_call.1} parent=1 // pred_check
      _
    $region19: #{tpu_custom_call.1} parent=1 // pred_check_branch
      %41 = sbr.rel (0) target = $region21
    $region20: #{tpu_custom_call.1} parent=1 // pred_region
      _
    $region21: #{tpu_custom_call.1} parent=1 // pred_fallthru
      _
    // Predicated region
    $region22: #{tpu_custom_call.1} parent=1 // pred_check
      _
    $region23: #{tpu_custom_call.1} parent=1 // pred_check_branch
      %43 = sbr.rel (0) target = $region25
    $region24: #{tpu_custom_call.1} parent=1 // pred_region
      _
    $region25: #{tpu_custom_call.1} parent=1 // pred_fallthru
      _
    // Predicated region
    $region26: #{tpu_custom_call.1} parent=1 // pred_check
      _
    $region27: #{tpu_custom_call.1} parent=1 // pred_check_branch
      %45 = sbr.rel (0) target = $region29
    $region28: #{tpu_custom_call.1} parent=1 // pred_region
      %46 = dma.done [#allocation3], 512
    $region29: #{tpu_custom_call.1} parent=1 // pred_fallthru
      _
    // Predicated region
    $region30: #{tpu_custom_call.1} parent=1 // pred_check
      _
    $region31: #{tpu_custom_call.1} parent=1 // pred_check_branch
      %48 = sbr.rel (0) target = $region33
    $region32: #{tpu_custom_call.1} parent=1 // pred_region
      %49 = dma.done [#allocation6], 16
    $region33: #{tpu_custom_call.1} parent=1 // pred_fallthru
      _
    %v50 = vld [vmem:[#allocation2] sm:$0xff]
    %v51 = vld [vmem:[#allocation2 + $0x8] sm:$0xff]
    %v52 = vmul.f32 %v50, %v51
    %v53 = vld [vmem:[#allocation2 + $0x10] sm:$0xff]
    %v54 = vmul.f32 %v50, %v53
    %v55 = vld [vmem:[#allocation2 + $0x18] sm:$0xff]
    %v56 = vmul.f32 %v50, %v55
    %v57 = vmul.f32 %v51, %v53
    %v58 = vmul.f32 %v51, %v55
    %v59 = vmul.f32 %v53, %v55
    %v60 = vld [vmem:[%s2] sm:$0xff]
    %v61 = vld [vmem:[%s2 + $0x8] sm:$0xff]
    %v62 = vld [vmem:[%s2 + $0x10] sm:$0xff]
    %v63 = vld [vmem:[%s3] sm:$0xff]
    %v64 = vld [vmem:[%s3 + $0x8] sm:$0xff]
    %v65 = vld [vmem:[%s3 + $0x10] sm:$0xff]
    %67 = vset.pattern.permute.xlu0 0
    %68 = vperm.xlu0 %67, %v63
    %v69 = vpop.permute.xlu0 %68
    %72 = vset.pattern.permute.xlu0 0
    %73 = vperm.xlu0 %72, %v64
    %v74 = vpop.permute.xlu0 %73
    %77 = vset.pattern.permute.xlu0 0
    %78 = vperm.xlu0 %77, %v65
    %v79 = vpop.permute.xlu0 %78
    %vm81 = vcmask 392192
    %v83 = vsel %vm81, %v60, 0
    %v86 = vsel %vm81, %v61, 0
    %v89 = vsel %vm81, %v62, 0
    %91 = vmatprep.subr.mxu0 0.0
    %92 = vmatpush1.msra.mxu0 %v52
    %93 = vmatprep.subr.mxu0 0.0
    %94 = vmatpush1.msra.mxu0 %v54
    %95 = vmatprep.subr.mxu0 0.0
    %96 = vmatpush1.msra.mxu0 %v56
    %97 = vmatprep.subr.mxu0 0.0
    %98 = vmatpush1.msra.mxu0 %v57
    %99 = vmatprep.subr.mxu0 0.0
    %100 = vmatpush1.msra.mxu0 %v58
    %101 = vmatprep.subr.mxu0 0.0
    %102 = vmatpush1.msra.mxu0 %v59
    %103 = vmatprep.subr.mxu0 0.0
    %104 = vmatpush1.msra.mxu0 0.0
    %105 = vmatprep.subr.mxu0 0.0
    %106 = vmatpush1.msra.mxu0 0.0
    %107 = vmatprep.subr.mxu0 0.0
    %108 = vmatpush1.msra.mxu0 0.0
    %109 = vmatprep.subr.mxu0 0.0
    %110 = vmatpush1.msra.mxu0 0.0
    %111 = vmatprep.subr.mxu0 0.0
    %112 = vmatpush1.msra.mxu0 0.0
    %113 = vmatprep.subr.mxu0 0.0
    %114 = vmatpush1.msra.mxu0 0.0
    %115 = vmatprep.subr.mxu0 0.0
    %116 = vmatpush1.msra.mxu0 0.0
    %117 = vmatprep.subr.mxu0 0.0
    %118 = vmatpush1.msra.mxu0 0.0
    %119 = vmatprep.subr.mxu0 0.0
    %120 = vmatpush1.msra.mxu0 0.0
    %121 = vmatprep.subr.mxu0 0.0
    %122 = vmatpush1.msra.mxu0 0.0
    %123 = vmatprep.subr.mxu0 0.0
    %124 = vmatpush1.msra.mxu0 0.0
    %125 = vmatprep.subr.mxu0 0.0
    %126 = vmatpush1.msra.mxu0 0.0
    %127 = vmatprep.subr.mxu0 0.0
    %128 = vmatpush1.msra.mxu0 0.0
    %129 = vmatprep.subr.mxu0 0.0
    %130 = vmatpush1.msra.mxu0 0.0
    %131 = vmatprep.subr.mxu0 0.0
    %132 = vmatpush1.msra.mxu0 0.0
    %133 = vmatprep.subr.mxu0 0.0
    %134 = vmatpush1.msra.mxu0 0.0
    %135 = vmatprep.subr.mxu0 0.0
    %136 = vmatpush1.msra.mxu0 0.0
    %137 = vmatprep.subr.mxu0 0.0
    %138 = vmatpush1.msra.mxu0 0.0
    %139 = vmatprep.subr.mxu0 0.0
    %140 = vmatpush1.msra.mxu0 0.0
    %141 = vmatprep.subr.mxu0 0.0
    %142 = vmatpush1.msra.mxu0 0.0
    %143 = vmatprep.subr.mxu0 0.0
    %144 = vmatpush1.msra.mxu0 0.0
    %145 = vmatprep.subr.mxu0 0.0
    %146 = vmatpush1.msra.mxu0 0.0
    %147 = vmatprep.subr.mxu0 0.0
    %148 = vmatpush1.msra.mxu0 0.0
    %149 = vmatprep.subr.mxu0 0.0
    %150 = vmatpush1.msra.mxu0 0.0
    %151 = vmatprep.subr.mxu0 0.0
    %152 = vmatpush1.msra.mxu0 0.0
    %153 = vmatprep.subr.mxu0 0.0
    %154 = vmatpush1.msra.mxu0 0.0
    %155 = vmatprep.mubr.f32.mxu0 0.0
    %156 = vmatmul.mubr.f32.gmra.mrb[0].mxu0 %v83
    %v157 = vpop.f32.mrb[0].mxu0
    %v158 = vadd.f32 %v69, %v157
    %v159 = vpop.f32.mrb[0].mxu0
    %160 = vmatprep.mubr.f32.mxu0 0.0
    %161 = vmatmul.mubr.f32.gmra.mrb[0].mxu0 %v86
    %v162 = vpop.f32.mrb[0].mxu0
    %v163 = vadd.f32 %v74, %v162
    %v164 = vpop.f32.mrb[0].mxu0
    %165 = vmatprep.mubr.f32.mxu0 0.0
    %166 = vmatmul.mubr.f32.gmra.mrb[0].mxu0 %v89
    %v167 = vpop.f32.mrb[0].mxu0
    %v168 = vadd.f32 %v79, %v167
    %v169 = vpop.f32.mrb[0].mxu0
    %170 = vdwg.mxu0
    %v171 = vmax.f32 %v158, 0.0
    %v172 = vmax.f32 %v163, 0.0
    %v173 = vmax.f32 %v168, 0.0
    %v174 = vld [vmem:[%s4] sm:$0x3f]
    %vm175 = vcmask 195584
    %v177 = vsel %vm175, %v174, 0
    %179 = vmatprep.subr.mxu0 0.0
    %180 = vmatpush1.msra.mxu0 %v171
    %181 = vmatprep.subr.mxu0 0.0
    %182 = vmatpush1.msra.mxu0 %v172
    %183 = vmatprep.subr.mxu0 0.0
    %184 = vmatpush1.msra.mxu0 %v173
    %185 = vmatprep.subr.mxu0 0.0
    %186 = vmatpush1.msra.mxu0 0.0
    %187 = vmatprep.subr.mxu0 0.0
    %188 = vmatpush1.msra.mxu0 0.0
    %189 = vmatprep.subr.mxu0 0.0
    %190 = vmatpush1.msra.mxu0 0.0
    %191 = vmatprep.subr.mxu0 0.0
    %192 = vmatpush1.msra.mxu0 0.0
    %193 = vmatprep.subr.mxu0 0.0
    %194 = vmatpush1.msra.mxu0 0.0
    %195 = vmatprep.subr.mxu0 0.0
    %196 = vmatpush1.msra.mxu0 0.0
    %197 = vmatprep.subr.mxu0 0.0
    %198 = vmatpush1.msra.mxu0 0.0
    %199 = vmatprep.subr.mxu0 0.0
    %200 = vmatpush1.msra.mxu0 0.0
    %201 = vmatprep.subr.mxu0 0.0
    %202 = vmatpush1.msra.mxu0 0.0
    %203 = vmatprep.subr.mxu0 0.0
    %204 = vmatpush1.msra.mxu0 0.0
    %205 = vmatprep.subr.mxu0 0.0
    %206 = vmatpush1.msra.mxu0 0.0
    %207 = vmatprep.subr.mxu0 0.0
    %208 = vmatpush1.msra.mxu0 0.0
    %209 = vmatprep.subr.mxu0 0.0
    %210 = vmatpush1.msra.mxu0 0.0
    %211 = vmatprep.subr.mxu0 0.0
    %212 = vmatpush1.msra.mxu0 0.0
    %213 = vmatprep.subr.mxu0 0.0
    %214 = vmatpush1.msra.mxu0 0.0
    %215 = vmatprep.subr.mxu0 0.0
    %216 = vmatpush1.msra.mxu0 0.0
    %217 = vmatprep.subr.mxu0 0.0
    %218 = vmatpush1.msra.mxu0 0.0
    %219 = vmatprep.subr.mxu0 0.0
    %220 = vmatpush1.msra.mxu0 0.0
    %221 = vmatprep.subr.mxu0 0.0
    %222 = vmatpush1.msra.mxu0 0.0
    %223 = vmatprep.subr.mxu0 0.0
    %224 = vmatpush1.msra.mxu0 0.0
    %225 = vmatprep.subr.mxu0 0.0
    %226 = vmatpush1.msra.mxu0 0.0
    %227 = vmatprep.subr.mxu0 0.0
    %228 = vmatpush1.msra.mxu0 0.0
    %229 = vmatprep.subr.mxu0 0.0
    %230 = vmatpush1.msra.mxu0 0.0
    %231 = vmatprep.subr.mxu0 0.0
    %232 = vmatpush1.msra.mxu0 0.0
    %233 = vmatprep.subr.mxu0 0.0
    %234 = vmatpush1.msra.mxu0 0.0
    %235 = vmatprep.subr.mxu0 0.0
    %236 = vmatpush1.msra.mxu0 0.0
    %237 = vmatprep.subr.mxu0 0.0
    %238 = vmatpush1.msra.mxu0 0.0
    %239 = vmatprep.subr.mxu0 0.0
    %240 = vmatpush1.msra.mxu0 0.0
    %241 = vmatprep.subr.mxu0 0.0
    %242 = vmatpush1.msra.mxu0 0.0
    %243 = vmatprep.mubr.f32.mxu0 0.0
    %244 = vmatmul.mubr.f32.gmra.mrb[0].mxu0 %v177
    %v245 = vpop.f32.mrb[0].mxu0
    %v246 = vadd.f32 0.0, %v245
    %v247 = vpop.f32.mrb[0].mxu0
    %248 = vdwg.mxu0
    %vm249 = vcmask 1045504
    %v250 = vsel %vm249, %v246, -inf
    %v251 = vrot.slane %v250, 4
    %v252 = vmax.f32 %v250, %v251
    %v253 = vrot.slane %v252, 2
    %v254 = vmax.f32 %v252, %v253
    %v255 = vrot.slane %v254, 1
    %v256 = vmax.f32 %v254, %v255
    %v257 = vsub.f32 %v246, %v256
    %v258 = vmul.f32 %v257, 1.442695
    %v259 = vpow.pop %v258
    %v260 = vsel %vm249, %v259, 0.0
    %v261 = vrot.slane %v260, 4
    %v262 = vadd.f32 %v260, %v261
    %v263 = vrot.slane %v262, 2
    %v264 = vadd.f32 %v262, %v263
    %v265 = vrot.slane %v264, 1
    %v266 = vadd.f32 %v264, %v265
    %v267 = vrcp.pop %v266
    %v268 = vmul.f32 %v259, %v267
    %v269 = vld [vmem:[%s5] sm:$0x3f]
    %v271 = vsel %vm81, %v269, 0
    %273 = vmatprep.subr.mxu0 0.0
    %274 = vmatpush1.msra.mxu0 %v52
    %275 = vmatprep.subr.mxu0 0.0
    %276 = vmatpush1.msra.mxu0 %v54
    %277 = vmatprep.subr.mxu0 0.0
    %278 = vmatpush1.msra.mxu0 %v56
    %279 = vmatprep.subr.mxu0 0.0
    %280 = vmatpush1.msra.mxu0 %v57
    %281 = vmatprep.subr.mxu0 0.0
    %282 = vmatpush1.msra.mxu0 %v58
    %283 = vmatprep.subr.mxu0 0.0
    %284 = vmatpush1.msra.mxu0 %v59
    %285 = vmatprep.subr.mxu0 0.0
    %286 = vmatpush1.msra.mxu0 0.0
    %287 = vmatprep.subr.mxu0 0.0
    %288 = vmatpush1.msra.mxu0 0.0
    %289 = vmatprep.subr.mxu0 0.0
    %290 = vmatpush1.msra.mxu0 0.0
    %291 = vmatprep.subr.mxu0 0.0
    %292 = vmatpush1.msra.mxu0 0.0
    %293 = vmatprep.subr.mxu0 0.0
    %294 = vmatpush1.msra.mxu0 0.0
    %295 = vmatprep.subr.mxu0 0.0
    %296 = vmatpush1.msra.mxu0 0.0
    %297 = vmatprep.subr.mxu0 0.0
    %298 = vmatpush1.msra.mxu0 0.0
    %299 = vmatprep.subr.mxu0 0.0
    %300 = vmatpush1.msra.mxu0 0.0
    %301 = vmatprep.subr.mxu0 0.0
    %302 = vmatpush1.msra.mxu0 0.0
    %303 = vmatprep.subr.mxu0 0.0
    %304 = vmatpush1.msra.mxu0 0.0
    %305 = vmatprep.subr.mxu0 0.0
    %306 = vmatpush1.msra.mxu0 0.0
    %307 = vmatprep.subr.mxu0 0.0
    %308 = vmatpush1.msra.mxu0 0.0
    %309 = vmatprep.subr.mxu0 0.0
    %310 = vmatpush1.msra.mxu0 0.0
    %311 = vmatprep.subr.mxu0 0.0
    %312 = vmatpush1.msra.mxu0 0.0
    %313 = vmatprep.subr.mxu0 0.0
    %314 = vmatpush1.msra.mxu0 0.0
    %315 = vmatprep.subr.mxu0 0.0
    %316 = vmatpush1.msra.mxu0 0.0
    %317 = vmatprep.subr.mxu0 0.0
    %318 = vmatpush1.msra.mxu0 0.0
    %319 = vmatprep.subr.mxu0 0.0
    %320 = vmatpush1.msra.mxu0 0.0
    %321 = vmatprep.subr.mxu0 0.0
    %322 = vmatpush1.msra.mxu0 0.0
    %323 = vmatprep.subr.mxu0 0.0
    %324 = vmatpush1.msra.mxu0 0.0
    %325 = vmatprep.subr.mxu0 0.0
    %326 = vmatpush1.msra.mxu0 0.0
    %327 = vmatprep.subr.mxu0 0.0
    %328 = vmatpush1.msra.mxu0 0.0
    %329 = vmatprep.subr.mxu0 0.0
    %330 = vmatpush1.msra.mxu0 0.0
    %331 = vmatprep.subr.mxu0 0.0
    %332 = vmatpush1.msra.mxu0 0.0
    %333 = vmatprep.subr.mxu0 0.0
    %334 = vmatpush1.msra.mxu0 0.0
    %335 = vmatprep.subr.mxu0 0.0
    %336 = vmatpush1.msra.mxu0 0.0
    %337 = vmatprep.mubr.f32.mxu0 0.0
    %338 = vmatmul.mubr.f32.gmra.mrb[0].mxu0 %v271
    %v339 = vpop.f32.mrb[0].mxu0
    %v340 = vadd.f32 0.0, %v339
    %v341 = vpop.f32.mrb[0].mxu0
    %342 = vdwg.mxu0
    %v343 = vmul.f32 %v268, %v340
    %v344 = vsel %vm249, %v343, 0.0
    %v345 = vrot.slane %v344, 4
    %v346 = vadd.f32 %v344, %v345
    %v347 = vrot.slane %v346, 2
    %v348 = vadd.f32 %v346, %v347
    %v349 = vrot.slane %v348, 1
    %v350 = vadd.f32 %v348, %v349
    %v351 = vld [vmem:[#allocation5] sm:$0x1]
    %v352 = vadd.f32 %v351, %v350
    %v353 = vxor.u32 %v352, 2147483648
    %v354 = vmul.f32 %v353, 1.442695
    %v355 = vpow.pop %v354
    %v356 = vadd.f32 %v355, 1.0
    %v357 = vrcp.pop %v356
    %v358 = vmul.f32 1.0, %v357
    %359 = vst [vmem:[#allocation7] sm:$0x1] %v358
    // Predicated region
    $region34: #{tpu_custom_call.1} parent=1 // pred_check
      _
    $region35: #{tpu_custom_call.1} parent=1 // pred_check_branch
      %361 = sbr.rel (0) target = $region37
    $region36: #{tpu_custom_call.1} parent=1 // pred_region
      %s363 = ssub.s32 16, 16
      %364 = vsyncadd [#allocation4], %s363
      %s366 = sshll.u32 [#allocation7], 4
      %s367 = int_to_ptr.vmem [resolvable:$true] %s366
      %369 = dma.vmem_to_hbm [thread:$0]  %s367, 16, %s6, [#allocation4]
    $region37: #{tpu_custom_call.1} parent=1 // pred_fallthru
      _
    // Predicated region
    $region38: #{tpu_custom_call.1} parent=1 // pred_check
      _
    $region39: #{tpu_custom_call.1} parent=1 // pred_check_branch
      %371 = sbr.rel (0) target = $region41
    $region40: #{tpu_custom_call.1} parent=1 // pred_region
      %372 = dma.done [#allocation4], 16
    $region41: #{tpu_custom_call.1} parent=1 // pred_fallthru
      _
    %373 = vsyncpa [#allocation3], 1
    %374 = vsyncpa [#allocation6], 1
    %375 = vsyncpa [#allocation4], 1

</llo_original>
